<compile_context>
chip_gen: v5e
topology: v5e:2x2
jax: 0.10.0
libtpu: 0.0.40
codegen_flags: <defaults>
</compile_context>

<pallas_src>
import functools

import jax
import jax.numpy as jnp
from jax import lax
from jax.experimental import pallas as pl
from jax.experimental.pallas import tpu as pltpu

EPS = 1e-5
MOMENTUM = 0.1


def _round_down(x, m):
    return (x // m) * m


def _tpu_vmem_bytes():
    try:
        cap = getattr(pltpu.get_tpu_info(), "vmem_capacity_bytes", None)
        if cap:
            return int(cap)
    except Exception:
        pass
    return 64 << 20  # conservative default (v7x-sized)


def _is_v5():
    try:
        return "v5" in jax.devices()[0].device_kind.lower()
    except Exception:
        return False


def _choose_tiles(nr, hw, itemsize, target_bytes):
    """Pick (row block, spatial block) for a (N*C, HW) view.

    Rows sit on the sublane axis (multiple of 8 / native packing, or the full
    extent when nr is odd); the spatial block is lane-aligned (multiple of 128
    or the full HW extent) and sized to ~target_bytes.
    """
    target_elems = max(target_bytes // itemsize, 8 * 128)
    pack = 8 * max(1, 4 // itemsize)          # rows per 32-bit sublane group
    if nr % pack == 0:
        row_q = pack
    elif nr % 8 == 0:
        row_q = 8
    else:
        row_q = None                          # odd row count -> full extent
    tr = nr if row_q is None else row_q
    per_row = max(target_elems // tr, 128)
    t_hw = hw if hw <= per_row else _round_down(per_row, 128)
    if row_q is not None:                     # grow rows to fill the budget
        tr = min(nr, max(row_q, _round_down(target_elems // t_hw, row_q)))
    return tr, t_hw


# ---------------------------------------------------------------------------
# Kernel 1: per-(sample, channel)-row partial sums  sum(x), sum(x^2).
# x viewed as (N*C, HW).  Grid = (row blocks ["parallel"], spatial tiles
# ["arbitrary" reduction]).  Output block index is constant across the spatial
# axis -> resident f32 (TR, 1) accumulators; the row sums stay on the sublane
# axis, so no sublane->lane relayout happens in the hot loop.
# ---------------------------------------------------------------------------
def _stats_kernel(x_ref, sx_ref, sx2_ref, *, hw, t_hw):
    j = pl.program_id(1)
    nj = pl.num_programs(1)

    @pl.when(j == 0)
    def _():
        sx_ref[...] = jnp.zeros_like(sx_ref)
        sx2_ref[...] = jnp.zeros_like(sx2_ref)

    def accumulate(x):
        # f32 accumulation; E[x^2]-mu^2 matches the module's math (clamped in
        # the epilogue to guard against cancellation).
        x = x.astype(jnp.float32)
        sx_ref[...] += jnp.sum(x, axis=-1, keepdims=True)
        sx2_ref[...] += jnp.sum(x * x, axis=-1, keepdims=True)

    if hw % t_hw != 0:
        # Only the last spatial tile has padded lanes -> unmasked fast path
        # for every other tile.
        @pl.when(j < nj - 1)
        def _():
            accumulate(x_ref[...])

        @pl.when(j == nj - 1)
        def _():
            x = x_ref[...]
            lane = lax.broadcasted_iota(jnp.int32, x.shape, 1)
            x = jnp.where(j * t_hw + lane < hw, x, jnp.zeros_like(x))
            accumulate(x)
    else:
        accumulate(x_ref[...])


# ---------------------------------------------------------------------------
# Kernel 2: y = x * scale + shift  (normalization + affine pre-folded).
# scale/shift arrive pre-shaped (TR, 1) in the compute dtype -> lane splat.
# ---------------------------------------------------------------------------
def _normalize_kernel(x_ref, scale_ref, shift_ref, y_ref, *, compute_dtype):
    x = x_ref[...].astype(compute_dtype)
    y = x * scale_ref[...] + shift_ref[...]
    y_ref[...] = y.astype(y_ref.dtype)


def samplewise_batchnorm(xs, weight, bias, running_mean, running_var,
                         training=True, momentum=MOMENTUM, eps=EPS):
    """xs: (N, C, H, W) — stacked list of N samples, each (C, H, W)."""
    N, C, H, W = xs.shape
    HW = H * W
    NR = N * C
    in_dtype = xs.dtype
    itemsize = jnp.dtype(in_dtype).itemsize

    # Contiguous (no-copy) reshape to the sublane-dense (N*C, HW) view.
    x2d = xs.reshape(NR, HW)

    # Generation-aware tile target & VMEM cap.
    if _tpu_vmem_bytes() >= (96 << 20):       # v5e / v6e: 128 MiB physical
        target_bytes, limit_cap = 6 << 20, 96 << 20
    else:                                     # v7x: 64 MiB physical
        target_bytes, limit_cap = 4 << 20, 48 << 20
    tr, t_hw = _choose_tiles(NR, HW, itemsize, target_bytes)
    ni = pl.cdiv(NR, tr)
    nj = pl.cdiv(HW, t_hw)
    tile_bytes = tr * t_hw * itemsize
    # in+out double-buffered (4 tiles) + elementwise temporaries + headroom;
    # scales with the tile so large C*HW never gets under-provisioned.
    vmem_limit = int(min(limit_cap, max(16 << 20, 8 * tile_bytes + (2 << 20))))

    if training:
        sx, sx2 = pl.pallas_call(
            functools.partial(_stats_kernel, hw=HW, t_hw=t_hw),
            out_shape=(jax.ShapeDtypeStruct((NR, 1), jnp.float32),
                       jax.ShapeDtypeStruct((NR, 1), jnp.float32)),
            grid_spec=pltpu.PrefetchScalarGridSpec(
                num_scalar_prefetch=0,
                grid=(ni, nj),
                in_specs=[pl.BlockSpec((tr, t_hw), lambda i, j: (i, j))],
                out_specs=[pl.BlockSpec((tr, 1), lambda i, j: (i, 0)),
                           pl.BlockSpec((tr, 1), lambda i, j: (i, 0))]),
            compiler_params=pltpu.CompilerParams(
                dimension_semantics=("parallel", "arbitrary"),
                vmem_limit_bytes=vmem_limit),
        )(x2d)
        # Tiny (N, C) epilogue: equal-weighting combine + running-stat update.
        mu_i = sx.reshape(N, C) / HW          # per-sample channel mean
        msq_i = sx2.reshape(N, C) / HW        # per-sample E[x^2]
        mu = jnp.mean(mu_i, axis=0)           # (C,)
        var = jnp.maximum(jnp.mean(msq_i, axis=0) - mu * mu, 0.0)  # biased
        new_rm = running_mean * (1.0 - momentum) + mu * momentum
        new_rv = running_var * (1.0 - momentum) + var * momentum
    else:
        mu = running_mean.astype(jnp.float32)
        var = running_var.astype(jnp.float32)
        new_rm, new_rv = running_mean, running_var

    # Fold normalization + affine into per-channel scale/shift, tiled per row
    # (row r = n*C + c -> channel c) and pre-shaped (NR, 1).
    scale_c = weight.astype(jnp.float32) * lax.rsqrt(var + eps)   # (C,)
    shift_c = bias.astype(jnp.float32) - mu * scale_c             # (C,)
    compute_dtype = (jnp.bfloat16
                     if in_dtype == jnp.bfloat16 and not _is_v5()
                     else jnp.float32)
    scale_rows = jnp.tile(scale_c, N).reshape(NR, 1).astype(compute_dtype)
    shift_rows = jnp.tile(shift_c, N).reshape(NR, 1).astype(compute_dtype)

    y2d = pl.pallas_call(
        functools.partial(_normalize_kernel, compute_dtype=compute_dtype),
        out_shape=jax.ShapeDtypeStruct((NR, HW), in_dtype),
        grid_spec=pltpu.PrefetchScalarGridSpec(
            num_scalar_prefetch=0,
            grid=(ni, nj),
            in_specs=[pl.BlockSpec((tr, t_hw), lambda i, j: (i, j)),
                      pl.BlockSpec((tr, 1), lambda i, j: (i, 0)),
                      pl.BlockSpec((tr, 1), lambda i, j: (i, 0))],
            out_specs=pl.BlockSpec((tr, t_hw), lambda i, j: (i, j))),
        compiler_params=pltpu.CompilerParams(
            dimension_semantics=("parallel", "parallel"),
            vmem_limit_bytes=vmem_limit),
    )(x2d, scale_rows, shift_rows)

    return y2d.reshape(N, C, H, W), new_rm, new_rv


# ---------------------------------------------------------------------------
# Pure-JAX reference of the PyTorch forward (training, equal_weighting=True).
# ---------------------------------------------------------------------------
def _reference(xs, weight, bias, eps=EPS):
    N, C, H, W = xs.shape
    x = xs.reshape(N, C, -1).astype(jnp.float32)
    mu_i = x.mean(axis=-1)                    # (N, C)
    var_i = x.var(axis=-1)                    # biased (unbiased=False)
    mu = mu_i.mean(axis=0)                    # (C,)
    var = (var_i + mu_i * mu_i).mean(axis=0) - mu * mu
    norm = (x - mu[None, :, None]) / jnp.sqrt(var[None, :, None] + eps)
    y = weight[None, :, None] * norm + bias[None, :, None]
    return y.reshape(N, C, H, W)


if __name__ == "__main__":
    key = jax.random.PRNGKey(0)

    # TODO(synk): num_batches_tracked counter is host-side module state; the
    # running-stat momentum update is returned from plain-JAX glue, not kernel.
    def run_case(N, C, H, W, dtype, atol, rtol):
        k = jax.random.fold_in(key, C)
        xs = (jax.random.normal(k, (N, C, H, W), jnp.float32) * 2.0 + 0.5)
        xs = xs.astype(dtype)
        weight = jnp.ones((C,), jnp.float32)
        bias = jnp.zeros((C,), jnp.float32)
        rm = jnp.zeros((C,), jnp.float32)
        rv = jnp.ones((C,), jnp.float32)
        y, _, _ = samplewise_batchnorm(xs, weight, bias, rm, rv, training=True)
        y = jax.block_until_ready(y)
        assert y.dtype == dtype
        y_ref = _reference(xs, weight, bias)
        assert jnp.allclose(y.astype(jnp.float32), y_ref, atol=atol, rtol=rtol), \
            f"mismatch vs ref (dtype={dtype}, C={C})"

    # f32, C divisible by sublane grouping through N*C
    run_case(2, 4, 16, 16, jnp.float32, 1e-4, 1e-4)
    # f32, odd channel count (full-row block path)
    run_case(2, 3, 16, 16, jnp.float32, 1e-4, 1e-4)
    # bf16 path (bf16 DMA + bf16 normalize math on v6e/v7x, f32 stats accum)
    run_case(2, 4, 16, 16, jnp.bfloat16, 5e-2, 5e-2)

    print("KERNEL_OK")
</pallas_src>

<mosaic_0001>
module attributes {stable_mosaic.version = 11 : i64} {
  func.func @_stats_kernel(%arg0: i32, %arg1: i32, %arg2: memref<8x256xf32, #tpu.memory_space<vmem>>, %arg3: memref<8x1xf32, #tpu.memory_space<vmem>>, %arg4: memref<8x1xf32, #tpu.memory_space<vmem>>) attributes {dimension_semantics = [#tpu.dimension_semantics<parallel>, #tpu.dimension_semantics<arbitrary>], iteration_bounds = array<i64: 1, 1>, scalar_prefetch = 0 : i64, scratch_operands = 0 : i64, tpu.core_type = #tpu.core_type<tc>, window_params = [{transform_indices = @transform_0, window_bounds = array<i64: 8, 256>}, {transform_indices = @transform_1, window_bounds = array<i64: 8, 1>}, {transform_indices = @transform_2, window_bounds = array<i64: 8, 1>}]} {
    %c0_i32 = arith.constant 0 : i32
    %0 = arith.cmpi eq, %arg1, %c0_i32 : i32
    %1 = arith.extui %0 : i1 to i32
    %c0_i32_0 = arith.constant 0 : i32
    %2 = arith.cmpi ne, %1, %c0_i32_0 : i32
    scf.if %2 {
      %cst_11 = arith.constant 0.000000e+00 : f32
      %15 = vector.broadcast %cst_11 : f32 to vector<8x1xf32>
      %c0_12 = arith.constant 0 : index
      %c0_13 = arith.constant 0 : index
      %16 = vector.load %arg3[%c0_12, %c0_13] : memref<8x1xf32, #tpu.memory_space<vmem>>, vector<8x1xf32>
      tpu.vector_store %arg3[%c0_12, %c0_13], %15 {strides = array<i32>} : memref<8x1xf32, #tpu.memory_space<vmem>>, vector<8x1xf32>,
      %cst_14 = arith.constant 0.000000e+00 : f32
      %17 = vector.broadcast %cst_14 : f32 to vector<8x1xf32>
      %c0_15 = arith.constant 0 : index
      %c0_16 = arith.constant 0 : index
      %18 = vector.load %arg4[%c0_15, %c0_16] : memref<8x1xf32, #tpu.memory_space<vmem>>, vector<8x1xf32>
      tpu.vector_store %arg4[%c0_15, %c0_16], %17 {strides = array<i32>} : memref<8x1xf32, #tpu.memory_space<vmem>>, vector<8x1xf32>,
    } else {
    }
    %c0 = arith.constant 0 : index
    %c0_1 = arith.constant 0 : index
    %3 = vector.load %arg2[%c0, %c0_1] : memref<8x256xf32, #tpu.memory_space<vmem>>, vector<8x256xf32>
    %c0_2 = arith.constant 0 : index
    %c0_3 = arith.constant 0 : index
    %4 = vector.load %arg3[%c0_2, %c0_3] : memref<8x1xf32, #tpu.memory_space<vmem>>, vector<8x1xf32>
    %cst = arith.constant dense<0.000000e+00> : vector<8xf32>
    %5 = vector.multi_reduction <add>, %3, %cst [1] : vector<8x256xf32> to vector<8xf32>
    %6 = vector.shape_cast %5 : vector<8xf32> to vector<8x1xf32>
    %7 = arith.addf %4, %6 : vector<8x1xf32>
    %c0_4 = arith.constant 0 : index
    %c0_5 = arith.constant 0 : index
    %8 = vector.load %arg3[%c0_4, %c0_5] : memref<8x1xf32, #tpu.memory_space<vmem>>, vector<8x1xf32>
    tpu.vector_store %arg3[%c0_4, %c0_5], %7 {strides = array<i32>} : memref<8x1xf32, #tpu.memory_space<vmem>>, vector<8x1xf32>,
    %c0_6 = arith.constant 0 : index
    %c0_7 = arith.constant 0 : index
    %9 = vector.load %arg4[%c0_6, %c0_7] : memref<8x1xf32, #tpu.memory_space<vmem>>, vector<8x1xf32>
    %10 = arith.mulf %3, %3 : vector<8x256xf32>
    %cst_8 = arith.constant dense<0.000000e+00> : vector<8xf32>
    %11 = vector.multi_reduction <add>, %10, %cst_8 [1] : vector<8x256xf32> to vector<8xf32>
    %12 = vector.shape_cast %11 : vector<8xf32> to vector<8x1xf32>
    %13 = arith.addf %9, %12 : vector<8x1xf32>
    %c0_9 = arith.constant 0 : index
    %c0_10 = arith.constant 0 : index
    %14 = vector.load %arg4[%c0_9, %c0_10] : memref<8x1xf32, #tpu.memory_space<vmem>>, vector<8x1xf32>
    tpu.vector_store %arg4[%c0_9, %c0_10], %13 {strides = array<i32>} : memref<8x1xf32, #tpu.memory_space<vmem>>, vector<8x1xf32>,
    return
  }
  func.func @transform_0(%arg0: i32, %arg1: i32) -> (i32, i32) {
    %c0_i32 = arith.constant 0 : i32
    return %arg0, %arg1 : i32, i32
  }
  func.func @transform_1(%arg0: i32, %arg1: i32) -> (i32, i32) {
    %c0_i32 = arith.constant 0 : i32
    %c0_i32_0 = arith.constant 0 : i32
    return %arg0, %c0_i32 : i32, i32
  }
  func.func @transform_2(%arg0: i32, %arg1: i32) -> (i32, i32) {
    %c0_i32 = arith.constant 0 : i32
    %c0_i32_0 = arith.constant 0 : i32
    return %arg0, %c0_i32 : i32, i32
  }
}

</mosaic_0001>

<llo_original>
// kernel: tpu_custom_call.1
$region0: #{tpu_custom_call.1}
  #allocation0 [shape = 'u32[]', space=smem, size = 0x4, offset = 0x4, fixed_abs, tag = 'smem constant byte address 0x4 - core index']
  #allocation1 [shape = 'u32[72,128]{1,0:T(1,128)}', space=vmem, size = 0x9000, scoped, tag = 'internal scratch']
  %s0 = inlined_call_operand.hbm [shape: f32[8,256], index: 0, kind: input, shape index: {}]
  %s1 = inlined_call_operand.vmem [shape: f32[8,1], index: 1, kind: output, shape index: {0}]
  %s2 = inlined_call_operand.vmem [shape: f32[8,1], index: 2, kind: output, shape index: {1}]
  %3 = xla_tuple %s1, %s2
  %s4 = sld [smem:[#allocation0]]
  $region30: #{tpu_custom_call.1} parent=0
    _
  %s6 = ssub.s32 1, %s4
  %s7 = scalar_select 0, %s6, %s4
  $region1: #{tpu_custom_call.1} parent=0
    #allocation2 [shape = 'u8[8192]{0}', space=vmem, size = 0x2000, scoped, tag = 'input window, operand 0, single buffered']
    #allocation3 [shape = 's32[1]{0}', space=sflag, size = 0x4, scoped, tag = 'scoped memory for tpu_custom_call.1']
    %8 = vsyncpa [#allocation3], 0
    // Predicated region
    $region2: #{tpu_custom_call.1} parent=1 // pred_check
      _
    $region3: #{tpu_custom_call.1} parent=1 // pred_check_branch
      %10 = sbr.rel (0) target = $region5
    $region4: #{tpu_custom_call.1} parent=1 // pred_region
      %12 = vsyncadd [#allocation3], 0
      %s14 = sshll.u32 %s0, 4
      %s15 = int_to_ptr.hbm [resolvable:$true] %s14
      %s16 = sshll.u32 [#allocation2], 4
      %s17 = int_to_ptr.vmem [resolvable:$true] %s16
      %19 = dma.hbm_to_vmem [thread:$0]  %s15, 256, %s17, [#allocation3]
    $region5: #{tpu_custom_call.1} parent=1 // pred_fallthru
      _
    // Predicated region
    $region6: #{tpu_custom_call.1} parent=1 // pred_check
      _
    $region7: #{tpu_custom_call.1} parent=1 // pred_check_branch
      %21 = sbr.rel (0) target = $region9
    $region8: #{tpu_custom_call.1} parent=1 // pred_region
      %23 = dma.done [#allocation3], 256
    $region9: #{tpu_custom_call.1} parent=1 // pred_fallthru
      _
    %p24 = scmp.eq.s32.totalorder 0, 0
    // Predicated region
    $region10: #{tpu_custom_call.1} parent=1 // pred_check
      %p25 = pneg %p24
    $region11: #{tpu_custom_call.1} parent=1 // pred_check_branch
      %27 = sbr.rel (%p25) target = $region13
    $region12: #{tpu_custom_call.1} parent=1 // pred_region
      %vm28 = vcmask 7168
      %29 = vst.msk [vmem:[%s1] sm:$0xff] %vm28, 0.0
      %30 = vst.msk [vmem:[%s2] sm:$0xff] %vm28, 0.0
    $region13: #{tpu_custom_call.1} parent=1 // pred_fallthru
      _
    %v31 = vld [vmem:[#allocation2] sm:$0xff]
    %v32 = vld [vmem:[#allocation2 + $0x8] sm:$0xff]
    %v33 = vld [vmem:[%s1] sm:$0xff]
    %v34 = vadd.f32 %v31, %v32
    %35 = vadd.xlane.f32.xlu0 %v34
    %v36 = vpop.xlane.xlu0 %35
    %v37 = vadd.f32 %v33, %v36
    %vm38 = vcmask 7168
    %39 = vst.msk [vmem:[%s1] sm:$0xff] %vm38, %v37
    %v40 = vld [vmem:[%s2] sm:$0xff]
    %v41 = vmul.f32 %v31, %v31
    %v42 = vmul.f32 %v32, %v32
    %v43 = vadd.f32 %v41, %v42
    %44 = vadd.xlane.f32.xlu0 %v43
    %v45 = vpop.xlane.xlu0 %44
    %v46 = vadd.f32 %v40, %v45
    %47 = vst.msk [vmem:[%s2] sm:$0xff] %vm38, %v46
    // Predicated region
    $region14: #{tpu_custom_call.1} parent=1 // pred_check
      _
    $region15: #{tpu_custom_call.1} parent=1 // pred_check_branch
      %49 = sbr.rel (0) target = $region17
    $region16: #{tpu_custom_call.1} parent=1 // pred_region
      _
    $region17: #{tpu_custom_call.1} parent=1 // pred_fallthru
      _
    // Predicated region
    $region18: #{tpu_custom_call.1} parent=1 // pred_check
      _
    $region19: #{tpu_custom_call.1} parent=1 // pred_check_branch
      %51 = sbr.rel (0) target = $region21
    $region20: #{tpu_custom_call.1} parent=1 // pred_region
      _
    $region21: #{tpu_custom_call.1} parent=1 // pred_fallthru
      _
    // Predicated region
    $region22: #{tpu_custom_call.1} parent=1 // pred_check
      _
    $region23: #{tpu_custom_call.1} parent=1 // pred_check_branch
      %53 = sbr.rel (0) target = $region25
    $region24: #{tpu_custom_call.1} parent=1 // pred_region
      _
    $region25: #{tpu_custom_call.1} parent=1 // pred_fallthru
      _
    // Predicated region
    $region26: #{tpu_custom_call.1} parent=1 // pred_check
      _
    $region27: #{tpu_custom_call.1} parent=1 // pred_check_branch
      %55 = sbr.rel (0) target = $region29
    $region28: #{tpu_custom_call.1} parent=1 // pred_region
      _
    $region29: #{tpu_custom_call.1} parent=1 // pred_fallthru
      _
    %56 = vsyncpa [#allocation3], 1

</llo_original>
